<compile_context>
chip_gen: v6e
topology: v6e:2x2x1
jax: 0.10.0
libtpu: 0.0.40
codegen_flags: <defaults>
</compile_context>

<pallas_src>
import functools
import math

import jax
import jax.numpy as jnp
from jax.experimental import pallas as pl
from jax.experimental.pallas import tpu as pltpu


def _build_pe_table(d_model: int, max_len: int) -> jnp.ndarray:
    """Sinusoidal positional-encoding table, shape (max_len, d_model), float32."""
    position = jnp.arange(0, max_len, dtype=jnp.float32)[:, None]            # (L, 1)
    div_term = jnp.exp(
        jnp.arange(0, d_model, 2, dtype=jnp.float32) * (-math.log(10000.0) / d_model)
    )                                                                         # (D/2,)
    ang = position * div_term                                                 # (L, D/2)
    pe = jnp.zeros((max_len, d_model), dtype=jnp.float32)
    pe = pe.at[:, 0::2].set(jnp.sin(ang))
    pe = pe.at[:, 1::2].set(jnp.cos(ang))
    return pe


def _pe_add_kernel(x_ref, pe_ref, o_ref, *, batch: int):
    # x_ref/o_ref: (tS, B*D); pe_ref: (tS, D).  Widen pe along lanes (VMEM-only).
    pe_wide = jnp.concatenate([pe_ref[...]] * batch, axis=-1)                 # (tS, B*D)
    o_ref[...] = (x_ref[...] + pe_wide).astype(o_ref.dtype)


def _pe_add_dropout_kernel(x_ref, pe_ref, bits_ref, o_ref, *,
                           batch: int, threshold: int, scale: float):
    # Inverted dropout via an integer threshold compare on raw uint32 randoms:
    #   keep  <=>  bits >= round(p * 2^32)      (P(keep) = 1 - p)
    # No shift / u32->f32 convert / extra multiply in the hot path.
    pe_wide = jnp.concatenate([pe_ref[...]] * batch, axis=-1)                 # (tS, B*D)
    y = x_ref[...] + pe_wide
    keep = bits_ref[...] >= jnp.uint32(threshold)
    o_ref[...] = jnp.where(keep, y * jnp.asarray(scale, y.dtype),
                           jnp.zeros_like(y)).astype(o_ref.dtype)


def _choose_row_tile(seq_len: int, row_bytes: int, target_bytes: int = 2 << 20) -> int:
    """Rows per block: ~2 MiB blocks (double-buffered in/out/bits stays well under
    the 16/32 MiB default scoped-VMEM on v5e/v6e/v7x), multiple of 8."""
    t = (target_bytes // max(row_bytes, 1)) // 8 * 8
    t = max(8, t)
    return seq_len if t >= seq_len else t


class PositionalEncodingPallas:
    """JAX/Pallas equivalent of the PyTorch PositionalEncoding module."""

    def __init__(self, d_model: int, dropout: float = 0.1, max_len: int = 256):
        self.d_model = d_model
        self.p = float(dropout)
        self.max_len = max_len
        self.pe = _build_pe_table(d_model, max_len)       # (max_len, d_model) f32

    def __call__(self, x: jnp.ndarray, *, training: bool = False, rng=None):
        S, B, D = x.shape
        assert D == self.d_model and S <= self.max_len
        dt = x.dtype
        itemsize = jnp.dtype(dt).itemsize

        # (S, B, D) -> (S, B*D): contiguous reshape; makes kernel tiles lane-dense
        # (last dim B*D) and sublane-dense (second-to-last tS), so stores are
        # unmasked vst instead of partial-lane stores.
        x2 = x.reshape(S, B * D)

        tS = _choose_row_tile(S, B * D * itemsize)
        grid = (pl.cdiv(S, tS),)

        # pe handed to the kernel in x.dtype; rows are selected by the BlockSpec
        # index_map (no host-side slice/copy) whenever the tile satisfies the
        # (8, 128) rule.  Tiny / odd S falls back to a single full-extent block.
        pe_full = self.pe if self.pe.dtype == dt else self.pe.astype(dt)
        if tS % 8 == 0:
            pe_in = pe_full                               # (max_len, D)
        else:
            pe_in = pe_full[:S]                           # (S, D); grid is (1,)

        data_spec = pl.BlockSpec((tS, B * D), lambda i: (i, 0))
        pe_spec = pl.BlockSpec((tS, D), lambda i: (i, 0))

        use_dropout = training and self.p > 0.0
        bytes_accessed = (2 * S * B * D + S * D) * itemsize
        if use_dropout:
            bytes_accessed += S * B * D * 4               # uint32 dropout bits
        cost = pl.CostEstimate(flops=S * B * D, transcendentals=0,
                               bytes_accessed=bytes_accessed)
        cparams = pltpu.CompilerParams(
            dimension_semantics=("parallel",),            # shard S tiles across v7x's 2 TCs
            vmem_limit_bytes=32 * 1024 * 1024,
        )

        if not use_dropout:
            kernel = functools.partial(_pe_add_kernel, batch=B)
            out2 = pl.pallas_call(
                kernel,
                out_shape=jax.ShapeDtypeStruct((S, B * D), dt),
                grid=grid,
                in_specs=[data_spec, pe_spec],
                out_specs=data_spec,
                compiler_params=cparams,
                cost_estimate=cost,
            )(x2, pe_in)
        else:
            if rng is None:
                rng = jax.random.PRNGKey(0)
            # TODO(synk): torch's dropout RNG stream cannot be bit-matched; the
            # semantics (keep prob 1-p, scale by 1/(1-p)) are reproduced.  Random
            # bits are drawn with jax.random outside the kernel because the
            # in-kernel TPU PRNG (pltpu.prng_seed/prng_random_bits) has no
            # CPU/interpret lowering; each tile gets its own slice of bits, so
            # dropout masks never repeat across tiles.
            bits = jax.random.bits(rng, (S, B * D), dtype=jnp.uint32)
            threshold = min(int(round(self.p * (2.0 ** 32))), 2 ** 32 - 1)
            scale = 1.0 / (1.0 - self.p)
            kernel = functools.partial(_pe_add_dropout_kernel, batch=B,
                                       threshold=threshold, scale=scale)
            out2 = pl.pallas_call(
                kernel,
                out_shape=jax.ShapeDtypeStruct((S, B * D), dt),
                grid=grid,
                in_specs=[data_spec, pe_spec, data_spec],
                out_specs=data_spec,
                compiler_params=cparams,
                cost_estimate=cost,
            )(x2, pe_in, bits)

        return out2.reshape(S, B, D)


if __name__ == "__main__":
    key = jax.random.PRNGKey(0)
    S, B, D = 8, 2, 128                    # seq=8, batch=2, d_model=128 (lane-dense)
    x = jax.random.normal(key, (S, B, D), dtype=jnp.float32)

    module = PositionalEncodingPallas(d_model=D, dropout=0.1, max_len=256)

    # Eval mode (dropout == identity): compare against the pure-JAX reference.
    y_eval = jax.block_until_ready(module(x, training=False))
    ref = x + module.pe[:S][:, None, :]
    assert y_eval.shape == (S, B, D)
    assert jnp.allclose(y_eval, ref, atol=1e-5, rtol=1e-5)

    # Training mode (inverted dropout): every output element must be either 0
    # or the kept value scaled by 1/(1-p).
    y_train = jax.block_until_ready(
        module(x, training=True, rng=jax.random.PRNGKey(42)))
    assert y_train.shape == (S, B, D)
    kept_val = ref * (1.0 / (1.0 - module.p))
    ok = jnp.isclose(y_train, 0.0, atol=1e-6) | jnp.isclose(
        y_train, kept_val, atol=1e-5, rtol=1e-5)
    assert bool(jnp.all(ok))

    print("KERNEL_OK")
</pallas_src>

<mosaic_0001>
module attributes {stable_mosaic.version = 11 : i64} {
  func.func @_pe_add_kernel(%arg0: i32, %arg1: memref<8x256xf32, #tpu.memory_space<vmem>>, %arg2: memref<8x128xf32, #tpu.memory_space<vmem>>, %arg3: memref<8x256xf32, #tpu.memory_space<vmem>>) attributes {dimension_semantics = [#tpu.dimension_semantics<parallel>], iteration_bounds = array<i64: 1>, scalar_prefetch = 0 : i64, scratch_operands = 0 : i64, tpu.core_type = #tpu.core_type<tc>, window_params = [{transform_indices = @transform_0, window_bounds = array<i64: 8, 256>}, {transform_indices = @transform_1, window_bounds = array<i64: 8, 128>}, {transform_indices = @transform_2, window_bounds = array<i64: 8, 256>}]} {
    %c0 = arith.constant 0 : index
    %c0_0 = arith.constant 0 : index
    %0 = vector.load %arg2[%c0, %c0_0] : memref<8x128xf32, #tpu.memory_space<vmem>>, vector<8x128xf32>
    %1 = tpu.concatenate %0, %0 in 1 : vector<8x128xf32>, vector<8x128xf32> -> vector<8x256xf32>
    %c0_1 = arith.constant 0 : index
    %c0_2 = arith.constant 0 : index
    %2 = vector.load %arg1[%c0_1, %c0_2] : memref<8x256xf32, #tpu.memory_space<vmem>>, vector<8x256xf32>
    %3 = arith.addf %2, %1 : vector<8x256xf32>
    %c0_3 = arith.constant 0 : index
    %c0_4 = arith.constant 0 : index
    %4 = vector.load %arg3[%c0_3, %c0_4] : memref<8x256xf32, #tpu.memory_space<vmem>>, vector<8x256xf32>
    tpu.vector_store %arg3[%c0_3, %c0_4], %3 {strides = array<i32>} : memref<8x256xf32, #tpu.memory_space<vmem>>, vector<8x256xf32>,
    return
  }
  func.func @transform_0(%arg0: i32) -> (i32, i32) {
    %c0_i32 = arith.constant 0 : i32
    %c0_i32_0 = arith.constant 0 : i32
    return %arg0, %c0_i32 : i32, i32
  }
  func.func @transform_1(%arg0: i32) -> (i32, i32) {
    %c0_i32 = arith.constant 0 : i32
    %c0_i32_0 = arith.constant 0 : i32
    return %arg0, %c0_i32 : i32, i32
  }
  func.func @transform_2(%arg0: i32) -> (i32, i32) {
    %c0_i32 = arith.constant 0 : i32
    %c0_i32_0 = arith.constant 0 : i32
    return %arg0, %c0_i32 : i32, i32
  }
}

</mosaic_0001>

<llo_original>
// kernel: tpu_custom_call.1
$region0: #{tpu_custom_call.1}
  #allocation0 [shape = 'u32[]', space=smem, size = 0x4, offset = 0x4, fixed_abs, tag = 'smem constant byte address 0x4 - core index']
  #allocation1 [shape = 'u32[144,128]{1,0:T(1,128)}', space=vmem, size = 0x12000, scoped, tag = 'internal scratch']
  %s0 = inlined_call_operand.hbm [shape: f32[8,256], index: 0, kind: input, shape index: {}]
  %s1 = inlined_call_operand.hbm [shape: f32[256,128], index: 1, kind: input, shape index: {}]
  %s2 = inlined_call_operand.hbm [shape: f32[8,256], index: 2, kind: output, shape index: {}]
  %s3 = sld [smem:[#allocation0]]
  $region26: #{tpu_custom_call.1} parent=0
    _
  %s5 = ssub.s32 1, %s3
  %s6 = scalar_select 0, %s5, %s3
  $region1: #{tpu_custom_call.1} parent=0
    #allocation2 [shape = 'u8[8192]{0}', space=vmem, size = 0x2000, scoped, tag = 'input window, operand 0, single buffered']
    #allocation3 [shape = 's32[1]{0}', space=sflag, size = 0x4, scoped, tag = 'scoped memory for tpu_custom_call.1']
    #allocation4 [shape = 's32[1]{0}', space=sflag, size = 0x4, scoped, tag = 'scoped memory for tpu_custom_call.1']
    #allocation5 [shape = 'u8[4096]{0}', space=vmem, size = 0x1000, scoped, tag = 'input window, operand 1, single buffered']
    #allocation6 [shape = 's32[1]{0}', space=sflag, size = 0x4, scoped, tag = 'scoped memory for tpu_custom_call.1']
    #allocation7 [shape = 'u8[8192]{0}', space=vmem, size = 0x2000, scoped, tag = 'output window, operand 0, single buffered']
    %7 = vsyncpa [#allocation3], 0
    %8 = vsyncpa [#allocation6], 0
    %9 = vsyncpa [#allocation4], 0
    // Predicated region
    $region2: #{tpu_custom_call.1} parent=1 // pred_check
      _
    $region3: #{tpu_custom_call.1} parent=1 // pred_check_branch
      %11 = sbr.rel (0) target = $region5
    $region4: #{tpu_custom_call.1} parent=1 // pred_region
      %s13 = ssub.s32 256, 256
      %14 = vsyncadd [#allocation3], %s13
      %s16 = sshll.u32 [#allocation2], 4
      %s17 = int_to_ptr.vmem [resolvable:$true] %s16
      %19 = dma.hbm_to_vmem [thread:$0]  %s0, 256, %s17, [#allocation3]
    $region5: #{tpu_custom_call.1} parent=1 // pred_fallthru
      _
    // Predicated region
    $region6: #{tpu_custom_call.1} parent=1 // pred_check
      _
    $region7: #{tpu_custom_call.1} parent=1 // pred_check_branch
      %21 = sbr.rel (0) target = $region9
    $region8: #{tpu_custom_call.1} parent=1 // pred_region
      %s23 = ssub.s32 128, 128
      %24 = vsyncadd [#allocation6], %s23
      %s26 = sshll.u32 [#allocation5], 4
      %s27 = int_to_ptr.vmem [resolvable:$true] %s26
      %29 = dma.hbm_to_vmem [thread:$0]  %s1, 128, %s27, [#allocation6]
    $region9: #{tpu_custom_call.1} parent=1 // pred_fallthru
      _
    // Predicated region
    $region10: #{tpu_custom_call.1} parent=1 // pred_check
      _
    $region11: #{tpu_custom_call.1} parent=1 // pred_check_branch
      %31 = sbr.rel (0) target = $region13
    $region12: #{tpu_custom_call.1} parent=1 // pred_region
      %32 = dma.done [#allocation3], 256
    $region13: #{tpu_custom_call.1} parent=1 // pred_fallthru
      _
    // Predicated region
    $region14: #{tpu_custom_call.1} parent=1 // pred_check
      _
    $region15: #{tpu_custom_call.1} parent=1 // pred_check_branch
      %34 = sbr.rel (0) target = $region17
    $region16: #{tpu_custom_call.1} parent=1 // pred_region
      %35 = dma.done [#allocation6], 128
    $region17: #{tpu_custom_call.1} parent=1 // pred_fallthru
      _
    %v36 = vld [vmem:[#allocation5] sm:$0xff]
    %v37 = vld [vmem:[#allocation2] sm:$0xff]
    %v38 = vld [vmem:[#allocation2 + $0x8] sm:$0xff]
    %v39 = vadd.f32 %v37, %v36
    %v40 = vadd.f32 %v38, %v36
    %41 = vst [vmem:[#allocation7] sm:$0xff] %v39
    %42 = vst [vmem:[#allocation7 + $0x8] sm:$0xff] %v40
    // Predicated region
    $region18: #{tpu_custom_call.1} parent=1 // pred_check
      _
    $region19: #{tpu_custom_call.1} parent=1 // pred_check_branch
      %44 = sbr.rel (0) target = $region21
    $region20: #{tpu_custom_call.1} parent=1 // pred_region
      %s46 = ssub.s32 256, 256
      %47 = vsyncadd [#allocation4], %s46
      %s49 = sshll.u32 [#allocation7], 4
      %s50 = int_to_ptr.vmem [resolvable:$true] %s49
      %52 = dma.vmem_to_hbm [thread:$0]  %s50, 256, %s2, [#allocation4]
    $region21: #{tpu_custom_call.1} parent=1 // pred_fallthru
      _
    // Predicated region
    $region22: #{tpu_custom_call.1} parent=1 // pred_check
      _
    $region23: #{tpu_custom_call.1} parent=1 // pred_check_branch
      %54 = sbr.rel (0) target = $region25
    $region24: #{tpu_custom_call.1} parent=1 // pred_region
      %55 = dma.done [#allocation4], 256
    $region25: #{tpu_custom_call.1} parent=1 // pred_fallthru
      _
    %56 = vsyncpa [#allocation3], 1
    %57 = vsyncpa [#allocation6], 1
    %58 = vsyncpa [#allocation4], 1

</llo_original>
